<compile_context>
chip_gen: v5e
topology: v5e:2x2
jax: 0.10.0
libtpu: 0.0.40
codegen_flags: <defaults>
</compile_context>

<pallas_src>
import jax
import jax.numpy as jnp
from jax.experimental import pallas as pl
from jax.experimental.pallas import tpu as pltpu

# Fixed widths from the PyTorch module: encoder task Linear -> 128,
# encoder common Linear -> 8, fc1 8->8, output 8->out_dim.
_H1 = 128       # per-network task-layer width
_H2 = 8         # per-network common / fc1 width
_LANES = 128    # lane-dense width used for the fused tail layers and output

# Row layout of the packed "tail" operand: one (536, 128) buffer holding the
# block-diagonal common/fc1/output weights and their biases (bias rows padded
# to 8 sublanes so every section starts on an 8-row tile boundary).
_W2_R0, _W2_R1 = 0, 256          # common layer weights  (256 -> 128)
_B2_R = 256                      # common bias row
_W3_R0, _W3_R1 = 264, 392        # fc1 layer weights     (128 -> 128)
_B3_R = 392                      # fc1 bias row
_W4_R0, _W4_R1 = 400, 528        # output layer weights  (128 -> 128)
_B4_R = 528                      # output bias row
_TAIL_ROWS = 536

_SMALL_BATCH = 256               # grid-free, whole-in-VMEM path for B <= this
_DEFAULT_BATCH_BLOCK = 512       # rows per grid step for large batches


# ----------------------------------------------------------------------------
# Pallas kernel: both RND networks (target + prediction), all four layers.
# ----------------------------------------------------------------------------
def _rnd_fused_kernel(x_ref, w1_ref, b1_ref, tail_ref, out_ref):
    # x_ref   : (TB, F)     batch rows (input dtype; cast to matmul dtype here)
    # w1_ref  : (F, 256)    [target | prediction] task-layer weights
    # b1_ref  : (1, 256)    task-layer biases (f32)
    # tail_ref: (536, 128)  packed block-diagonal common/fc1/output weights + biases
    # out_ref : (TB, 128)   lane-dense output; cols [0:D) target, [D:2D) prediction
    md = w1_ref.dtype                                   # matmul dtype (f32 / bf16)
    x = x_ref[...].astype(md)

    # Encoder task layer (Linear, NO activation): both networks in one 256-wide dot.
    h1 = jnp.dot(x, w1_ref[...], preferred_element_type=jnp.float32)
    h1 = h1 + b1_ref[...].astype(jnp.float32)                              # (TB, 256)

    # Encoder common layer: relu(Linear(128, 8)) per network, block-diagonal.
    h2 = jnp.dot(h1.astype(md), tail_ref[_W2_R0:_W2_R1, :],
                 preferred_element_type=jnp.float32)
    h2 = jnp.maximum(h2 + tail_ref[_B2_R:_B2_R + 1, :].astype(jnp.float32),
                     0.0)                                                  # (TB, 128)

    # fc1: relu(Linear(8, 8)) per network.
    h3 = jnp.dot(h2.astype(md), tail_ref[_W3_R0:_W3_R1, :],
                 preferred_element_type=jnp.float32)
    h3 = jnp.maximum(h3 + tail_ref[_B3_R:_B3_R + 1, :].astype(jnp.float32),
                     0.0)                                                  # (TB, 128)

    # output: Linear(8, out_dim) per network (no activation).
    y = jnp.dot(h3.astype(md), tail_ref[_W4_R0:_W4_R1, :],
                preferred_element_type=jnp.float32)
    out_ref[...] = y + tail_ref[_B4_R:_B4_R + 1, :].astype(jnp.float32)    # (TB, 128)
    # TODO(synk): for large-B reward-only use, fuse the per-row (pred-tgt)^2
    # reduction here and emit a (TB, 1) reward instead of the (TB, 128) slab.


# ----------------------------------------------------------------------------
# Weight packing (do this ONCE per (params, task_id), outside the step).
# ----------------------------------------------------------------------------
def _pack_fused_params(net_t, net_p, task_id, matmul_dtype):
    """Pack target + prediction RNDNetworks (one task head) into:
         w1   : (F, 256)     task layers side-by-side           (matmul_dtype)
         b1   : (1, 256)     task-layer biases                  (f32)
         tail : (536, 128)   block-diagonal common/fc1/output + biases
    Weights are expected pre-transposed as (in_features, out_features)."""
    wt_t, bt_t = net_t["task_layers"][task_id]        # (F, 128), (1, 128)
    wt_p, bt_p = net_p["task_layers"][task_id]
    wc_t, bc_t = net_t["common"]                      # (128, 8), (1, 8)
    wc_p, bc_p = net_p["common"]
    wf_t, bf_t = net_t["fc1"]                         # (8, 8),   (1, 8)
    wf_p, bf_p = net_p["fc1"]
    wo_t, bo_t = net_t["output"]                      # (8, out), (1, out)
    wo_p, bo_p = net_p["output"]
    out_dim = wo_t.shape[1]
    assert 2 * out_dim <= _LANES, "fused output must fit in 128 lanes"

    w1 = jnp.concatenate([wt_t, wt_p], axis=1).astype(matmul_dtype)   # (F, 256)
    b1 = jnp.concatenate([bt_t, bt_p], axis=1).astype(jnp.float32)    # (1, 256)

    def block_diag(w_t, w_p, k, row_t, col_t, row_p, col_p):
        m = jnp.zeros((k, _LANES), jnp.float32)
        m = m.at[row_t:row_t + w_t.shape[0], col_t:col_t + w_t.shape[1]].set(w_t)
        m = m.at[row_p:row_p + w_p.shape[0], col_p:col_p + w_p.shape[1]].set(w_p)
        return m

    def bias_rows(b_t, b_p, col_t, col_p):
        r = jnp.zeros((8, _LANES), jnp.float32)       # bias row + 7 pad rows
        r = r.at[0, col_t:col_t + b_t.shape[1]].set(b_t[0])
        r = r.at[0, col_p:col_p + b_p.shape[1]].set(b_p[0])
        return r

    w2 = block_diag(wc_t, wc_p, 2 * _H1, 0, 0, _H1, _H2)          # (256, 128)
    b2 = bias_rows(bc_t, bc_p, 0, _H2)
    w3 = block_diag(wf_t, wf_p, _LANES, 0, 0, _H2, _H2)           # (128, 128)
    b3 = bias_rows(bf_t, bf_p, 0, _H2)
    w4 = block_diag(wo_t, wo_p, _LANES, 0, 0, _H2, out_dim)       # (128, 128)
    b4 = bias_rows(bo_t, bo_p, 0, out_dim)

    tail = jnp.concatenate([w2, b2, w3, b3, w4, b4],
                           axis=0).astype(matmul_dtype)           # (536, 128)
    return w1, b1, tail, out_dim


def pack_rnd_model(model_params, task_id, *, matmul_dtype=jnp.float32):
    """Pack target+prediction networks.  Call once, reuse across steps."""
    return _pack_fused_params(model_params["target"], model_params["prediction"],
                              task_id, matmul_dtype)


def pack_rnd_network(net_params, task_id, *, matmul_dtype=jnp.float32):
    """Pack a single RNDNetwork (duplicated into both halves of the kernel)."""
    return _pack_fused_params(net_params, net_params, task_id, matmul_dtype)


# ----------------------------------------------------------------------------
# pallas_call wrappers
# ----------------------------------------------------------------------------
def _round_up(x, m):
    return ((x + m - 1) // m) * m


def _fused_forward(x, w1, b1, tail, *, batch_block=_DEFAULT_BATCH_BLOCK):
    B, F = x.shape
    assert w1.shape == (F, 2 * _H1)
    assert b1.shape == (1, 2 * _H1)
    assert tail.shape == (_TAIL_ROWS, _LANES)

    cost = pl.CostEstimate(
        flops=2 * B * (F * 2 * _H1 + 2 * _H1 * _LANES + 2 * _LANES * _LANES),
        transcendentals=0,
        bytes_accessed=(x.size * x.dtype.itemsize
                        + w1.size * w1.dtype.itemsize
                        + b1.size * b1.dtype.itemsize
                        + tail.size * tail.dtype.itemsize
                        + B * _LANES * 4),
    )
    out_shape = jax.ShapeDtypeStruct((B, _LANES), jnp.float32)

    if B <= _SMALL_BATCH:
        # Tiny batches: single grid-free invocation, no pipelining machinery;
        # all operands (a few hundred KiB) live whole in VMEM.
        return pl.pallas_call(
            _rnd_fused_kernel,
            out_shape=out_shape,
            in_specs=[pl.BlockSpec(memory_space=pltpu.MemorySpace.VMEM)] * 4,
            out_specs=pl.BlockSpec(memory_space=pltpu.MemorySpace.VMEM),
            cost_estimate=cost,
        )(x, w1, b1, tail)

    # Large batches: shard rows over a "parallel" grid.  Block sized for ~512
    # rows/step (amortizes ~0.35us per-step overhead + MXU weight loads) but
    # capped so the grid has >= 2 steps (both v7x TensorCores).  Ragged tails
    # are handled by Pallas block padding: rows are independent, so garbage
    # reads in the padded region only feed out-of-bounds writes, which are
    # dropped -- no wrapper-side padding pass over x is needed.
    bb = min(batch_block, _round_up(pl.cdiv(B, 2), 8))
    return pl.pallas_call(
        _rnd_fused_kernel,
        out_shape=out_shape,
        grid=(pl.cdiv(B, bb),),
        in_specs=[
            pl.BlockSpec((bb, F), lambda i: (i, 0)),
            pl.BlockSpec((F, 2 * _H1), lambda i: (0, 0)),
            pl.BlockSpec((1, 2 * _H1), lambda i: (0, 0)),
            pl.BlockSpec((_TAIL_ROWS, _LANES), lambda i: (0, 0)),
        ],
        out_specs=pl.BlockSpec((bb, _LANES), lambda i: (i, 0)),
        compiler_params=pltpu.CompilerParams(
            dimension_semantics=("parallel",)),
        cost_estimate=cost,
    )(x, w1, b1, tail)


def rnd_model_apply(packed, x, *, batch_block=_DEFAULT_BATCH_BLOCK):
    """RNDModel.forward with pre-packed weights: (target_out, prediction_out)."""
    # TODO(synk): add a custom_vjp if this is ever used under jax.grad
    # (pallas_call has no autodiff rule; forward semantics only here).
    w1, b1, tail, out_dim = packed
    y = _fused_forward(x, w1, b1, tail, batch_block=batch_block)
    tgt = jax.lax.stop_gradient(y[:, :out_dim])        # target net is frozen
    pred = y[:, out_dim:2 * out_dim]
    return tgt, pred


def rnd_network_apply(packed, x, *, batch_block=_DEFAULT_BATCH_BLOCK):
    """RNDNetwork.forward (the spec module) with pre-packed weights."""
    w1, b1, tail, out_dim = packed
    y = _fused_forward(x, w1, b1, tail, batch_block=batch_block)
    return y[:, :out_dim]


# Convenience wrappers matching the PyTorch signatures.  NOTE: these re-pack
# the weights every call; in a loop, pack once and use *_apply instead.
def rnd_model_forward(model_params, x, task_id, **kw):
    return rnd_model_apply(pack_rnd_model(model_params, task_id), x, **kw)


def rnd_network_forward(net_params, x, task_id, **kw):
    return rnd_network_apply(pack_rnd_network(net_params, task_id), x, **kw)


# ----------------------------------------------------------------------------
# Parameter construction (deterministic, PyTorch-style uniform init).
# Weights are stored pre-transposed as (in_features, out_features).
# ----------------------------------------------------------------------------
def _init_linear(key, in_features, out_features):
    kw, kb = jax.random.split(key)
    bound = 1.0 / jnp.sqrt(jnp.float32(in_features))
    w = jax.random.uniform(kw, (in_features, out_features), jnp.float32,
                           -bound, bound)
    b = jax.random.uniform(kb, (1, out_features), jnp.float32, -bound, bound)
    return w, b


def init_rnd_network(key, list_of_input_sizes, output_dim):
    n_tasks = len(list_of_input_sizes)
    keys = jax.random.split(key, n_tasks + 3)
    task_layers = [_init_linear(keys[i], in_size, _H1)
                   for i, in_size in enumerate(list_of_input_sizes)]
    w_common, b_common = _init_linear(keys[n_tasks + 0], _H1, _H2)
    w_fc1, b_fc1 = _init_linear(keys[n_tasks + 1], _H2, _H2)
    w_out, b_out = _init_linear(keys[n_tasks + 2], _H2, output_dim)
    return {"task_layers": task_layers, "common": (w_common, b_common),
            "fc1": (w_fc1, b_fc1), "output": (w_out, b_out)}


def init_rnd_model(key, list_of_input_sizes, output_dim):
    k_tgt, k_pred = jax.random.split(key)
    return {"target": init_rnd_network(k_tgt, list_of_input_sizes, output_dim),
            "prediction": init_rnd_network(k_pred, list_of_input_sizes,
                                           output_dim)}


def _network_params_for_task(net, task_id):
    w_task, b_task = net["task_layers"][task_id]
    w_common, b_common = net["common"]
    w_fc1, b_fc1 = net["fc1"]
    w_out, b_out = net["output"]
    return (w_task, b_task, w_common, b_common, w_fc1, b_fc1, w_out, b_out)


# ----------------------------------------------------------------------------
# Pure-JAX reference for verification (original, unfused layout).
# ----------------------------------------------------------------------------
def _ref_network(x, params):
    (w_task, b_task, w_common, b_common, w_fc1, b_fc1, w_out, b_out) = params
    h = x @ w_task + b_task
    h = jnp.maximum(h @ w_common + b_common, 0.0)
    h = jnp.maximum(h @ w_fc1 + b_fc1, 0.0)
    return h @ w_out + b_out


if __name__ == "__main__":
    list_of_input_sizes = [16, 32]   # two task heads
    output_dim = 4
    task_id = 1                      # static python int -> picks task_1 weights

    key = jax.random.PRNGKey(0)
    k_params, k_x1, k_x2 = jax.random.split(key, 3)
    model_params = init_rnd_model(k_params, list_of_input_sizes, output_dim)
    F = list_of_input_sizes[task_id]

    ref_t_params = _network_params_for_task(model_params["target"], task_id)
    ref_p_params = _network_params_for_task(model_params["prediction"], task_id)

    # Pack ONCE (hoisted out of the forward path), reuse across all calls.
    packed = pack_rnd_model(model_params, task_id)

    # --- small batch: grid-free path ---
    x_small = jax.random.normal(k_x1, (8, F), jnp.float32)
    tgt, pred = jax.block_until_ready(rnd_model_apply(packed, x_small))
    assert tgt.shape == (8, output_dim) and pred.shape == (8, output_dim)
    assert jnp.allclose(tgt, _ref_network(x_small, ref_t_params),
                        atol=1e-4, rtol=1e-4)
    assert jnp.allclose(pred, _ref_network(x_small, ref_p_params),
                        atol=1e-4, rtol=1e-4)

    # --- large ragged batch: parallel batch-grid path (2 blocks, padded edge) ---
    x_big = jax.random.normal(k_x2, (600, F), jnp.float32)
    tgt_b, pred_b = jax.block_until_ready(rnd_model_apply(packed, x_big))
    assert jnp.allclose(tgt_b, _ref_network(x_big, ref_t_params),
                        atol=1e-4, rtol=1e-4)
    assert jnp.allclose(pred_b, _ref_network(x_big, ref_p_params),
                        atol=1e-4, rtol=1e-4)

    # --- single-network RNDNetwork.forward (the spec module) ---
    packed_net = pack_rnd_network(model_params["prediction"], task_id)
    single = jax.block_until_ready(rnd_network_apply(packed_net, x_small))
    assert jnp.allclose(single, _ref_network(x_small, ref_p_params),
                        atol=1e-4, rtol=1e-4)

    # --- optional bf16 matmul path (v6e/v7x); relaxed tolerance ---
    packed_bf16 = pack_rnd_model(model_params, task_id,
                                 matmul_dtype=jnp.bfloat16)
    tgt_h, pred_h = jax.block_until_ready(rnd_model_apply(packed_bf16, x_small))
    assert jnp.allclose(tgt_h, _ref_network(x_small, ref_t_params),
                        atol=1e-1, rtol=1e-1)
    assert jnp.allclose(pred_h, _ref_network(x_small, ref_p_params),
                        atol=1e-1, rtol=1e-1)

    print("KERNEL_OK")
</pallas_src>

<mosaic_0001>
module attributes {stable_mosaic.version = 11 : i64} {
  func.func @_rnd_fused_kernel(%arg0: memref<8x32xf32, #tpu.memory_space<vmem>>, %arg1: memref<32x256xf32, #tpu.memory_space<vmem>>, %arg2: memref<1x256xf32, #tpu.memory_space<vmem>>, %arg3: memref<536x128xf32, #tpu.memory_space<vmem>>, %arg4: memref<8x128xf32, #tpu.memory_space<vmem>>) attributes {dimension_semantics = [], scalar_prefetch = 0 : i64, scratch_operands = 0 : i64, tpu.core_type = #tpu.core_type<tc>} {
    %c0 = arith.constant 0 : index
    %c0_0 = arith.constant 0 : index
    %0 = vector.load %arg0[%c0, %c0_0] : memref<8x32xf32, #tpu.memory_space<vmem>>, vector<8x32xf32>
    %c0_1 = arith.constant 0 : index
    %c0_2 = arith.constant 0 : index
    %1 = vector.load %arg1[%c0_1, %c0_2] : memref<32x256xf32, #tpu.memory_space<vmem>>, vector<32x256xf32>
    %cst = arith.constant dense<0.000000e+00> : vector<8x256xf32>
    %2 = tpu.matmul %0, %1, %cst {dimension_numbers = #tpu.dot_dimension_numbers<[1], [0], [0], [1], [0, 0, 1, 1], [], []>} : vector<8x32xf32>, vector<32x256xf32>, vector<8x256xf32> -> vector<8x256xf32>
    %c0_3 = arith.constant 0 : index
    %c0_4 = arith.constant 0 : index
    %3 = vector.load %arg2[%c0_3, %c0_4] : memref<1x256xf32, #tpu.memory_space<vmem>>, vector<1x256xf32>
    %4 = vector.broadcast %3 : vector<1x256xf32> to vector<8x256xf32>
    %5 = arith.addf %2, %4 : vector<8x256xf32>
    %c0_5 = arith.constant 0 : index
    %c0_6 = arith.constant 0 : index
    %6 = vector.load %arg3[%c0_5, %c0_6] : memref<536x128xf32, #tpu.memory_space<vmem>>, vector<256x128xf32>
    %cst_7 = arith.constant dense<0.000000e+00> : vector<8x128xf32>
    %7 = tpu.matmul %5, %6, %cst_7 {dimension_numbers = #tpu.dot_dimension_numbers<[1], [0], [0], [1], [0, 0, 1, 1], [], []>} : vector<8x256xf32>, vector<256x128xf32>, vector<8x128xf32> -> vector<8x128xf32>
    %c256 = arith.constant 256 : index
    %c0_8 = arith.constant 0 : index
    %8 = vector.load %arg3[%c256, %c0_8] : memref<536x128xf32, #tpu.memory_space<vmem>>, vector<1x128xf32>
    %9 = vector.broadcast %8 : vector<1x128xf32> to vector<8x128xf32>
    %10 = arith.addf %7, %9 : vector<8x128xf32>
    %cst_9 = arith.constant 0.000000e+00 : f32
    %11 = vector.broadcast %cst_9 : f32 to vector<8x128xf32>
    %12 = arith.maximumf %10, %11 : vector<8x128xf32>
    %c264 = arith.constant 264 : index
    %c0_10 = arith.constant 0 : index
    %13 = vector.load %arg3[%c264, %c0_10] : memref<536x128xf32, #tpu.memory_space<vmem>>, vector<128x128xf32>
    %cst_11 = arith.constant dense<0.000000e+00> : vector<8x128xf32>
    %14 = tpu.matmul %12, %13, %cst_11 {dimension_numbers = #tpu.dot_dimension_numbers<[1], [0], [0], [1], [0, 0, 1, 1], [], []>} : vector<8x128xf32>, vector<128x128xf32>, vector<8x128xf32> -> vector<8x128xf32>
    %c392 = arith.constant 392 : index
    %c0_12 = arith.constant 0 : index
    %15 = vector.load %arg3[%c392, %c0_12] : memref<536x128xf32, #tpu.memory_space<vmem>>, vector<1x128xf32>
    %16 = vector.broadcast %15 : vector<1x128xf32> to vector<8x128xf32>
    %17 = arith.addf %14, %16 : vector<8x128xf32>
    %cst_13 = arith.constant 0.000000e+00 : f32
    %18 = vector.broadcast %cst_13 : f32 to vector<8x128xf32>
    %19 = arith.maximumf %17, %18 : vector<8x128xf32>
    %c400 = arith.constant 400 : index
    %c0_14 = arith.constant 0 : index
    %20 = vector.load %arg3[%c400, %c0_14] : memref<536x128xf32, #tpu.memory_space<vmem>>, vector<128x128xf32>
    %cst_15 = arith.constant dense<0.000000e+00> : vector<8x128xf32>
    %21 = tpu.matmul %19, %20, %cst_15 {dimension_numbers = #tpu.dot_dimension_numbers<[1], [0], [0], [1], [0, 0, 1, 1], [], []>} : vector<8x128xf32>, vector<128x128xf32>, vector<8x128xf32> -> vector<8x128xf32>
    %c528 = arith.constant 528 : index
    %c0_16 = arith.constant 0 : index
    %22 = vector.load %arg3[%c528, %c0_16] : memref<536x128xf32, #tpu.memory_space<vmem>>, vector<1x128xf32>
    %23 = vector.broadcast %22 : vector<1x128xf32> to vector<8x128xf32>
    %24 = arith.addf %21, %23 : vector<8x128xf32>
    %c0_17 = arith.constant 0 : index
    %c0_18 = arith.constant 0 : index
    %25 = vector.load %arg4[%c0_17, %c0_18] : memref<8x128xf32, #tpu.memory_space<vmem>>, vector<8x128xf32>
    tpu.vector_store %arg4[%c0_17, %c0_18], %24 {strides = array<i32>} : memref<8x128xf32, #tpu.memory_space<vmem>>, vector<8x128xf32>,
    return
  }
}

</mosaic_0001>

<llo_original>
// kernel: tpu_custom_call.1
$region0: #{tpu_custom_call.1}
  #allocation0 [shape = 'u32[]', space=smem, size = 0x4, offset = 0x4, fixed_abs, tag = 'smem constant byte address 0x4 - core index']
  #allocation1 [shape = 'u32[72,128]{1,0:T(1,128)}', space=vmem, size = 0x9000, scoped, tag = 'internal scratch']
  %s0 = inlined_call_operand.hbm [shape: f32[8,32], index: 0, kind: input, shape index: {}]
  %s1 = inlined_call_operand.hbm [shape: f32[32,256], index: 1, kind: input, shape index: {}]
  %s2 = inlined_call_operand.hbm [shape: f32[1,256], index: 2, kind: input, shape index: {}]
  %s3 = inlined_call_operand.hbm [shape: f32[536,128], index: 3, kind: input, shape index: {}]
  %s4 = inlined_call_operand.hbm [shape: f32[8,128], index: 4, kind: output, shape index: {}]
  %s5 = sld [smem:[#allocation0]]
  $region42: #{tpu_custom_call.1} parent=0
    _
  %s7 = ssub.s32 1, %s5
  %s8 = scalar_select 0, %s7, %s5
  $region1: #{tpu_custom_call.1} parent=0
    #allocation2 [shape = 'u8[4096]{0}', space=vmem, size = 0x1000, scoped, tag = 'input window, operand 0, single buffered']
    #allocation3 [shape = 's32[1]{0}', space=sflag, size = 0x4, scoped, tag = 'scoped memory for tpu_custom_call.1']
    #allocation4 [shape = 's32[1]{0}', space=sflag, size = 0x4, scoped, tag = 'scoped memory for tpu_custom_call.1']
    #allocation5 [shape = 'u8[32768]{0}', space=vmem, size = 0x8000, scoped, tag = 'input window, operand 1, single buffered']
    #allocation6 [shape = 's32[1]{0}', space=sflag, size = 0x4, scoped, tag = 'scoped memory for tpu_custom_call.1']
    #allocation7 [shape = 'u8[1024]{0}', space=vmem, size = 0x400, scoped, tag = 'input window, operand 2, single buffered']
    #allocation8 [shape = 'u8[274432]{0}', space=vmem, size = 0x43000, scoped, tag = 'input window, operand 3, single buffered']
    #allocation9 [shape = 's32[1]{0}', space=sflag, size = 0x4, scoped, tag = 'scoped memory for tpu_custom_call.1']
    #allocation10 [shape = 'u8[4096]{0}', space=vmem, size = 0x1000, scoped, tag = 'output window, operand 0, single buffered']
    %9 = vsyncpa [#allocation3], 0
    %10 = vsyncpa [#allocation6], 0
    %11 = vsyncpa [#allocation9], 0
    %12 = vsyncpa [#allocation4], 0
    // Predicated region
    $region2: #{tpu_custom_call.1} parent=1 // pred_check
      _
    $region3: #{tpu_custom_call.1} parent=1 // pred_check_branch
      %14 = sbr.rel (0) target = $region5
    $region4: #{tpu_custom_call.1} parent=1 // pred_region
      %16 = vsyncadd [#allocation3], 0
      %s18 = sshll.u32 %s0, 4
      %s19 = int_to_ptr.hbm [resolvable:$true] %s18
      %s20 = sshll.u32 [#allocation2], 4
      %s21 = int_to_ptr.vmem [resolvable:$true] %s20
      %23 = dma.hbm_to_vmem [thread:$0]  %s19, 128, %s21, [#allocation3]
    $region5: #{tpu_custom_call.1} parent=1 // pred_fallthru
      _
    // Predicated region
    $region6: #{tpu_custom_call.1} parent=1 // pred_check
      _
    $region7: #{tpu_custom_call.1} parent=1 // pred_check_branch
      %25 = sbr.rel (0) target = $region9
    $region8: #{tpu_custom_call.1} parent=1 // pred_region
      %27 = vsyncadd [#allocation6], 0
      %s28 = sshll.u32 %s1, 4
      %s29 = int_to_ptr.hbm [resolvable:$true] %s28
      %s30 = sshll.u32 [#allocation5], 4
      %s31 = int_to_ptr.vmem [resolvable:$true] %s30
      %36 = dma.hbm_to_vmem [thread:$0]  %s29, 1024, %s31, [#allocation6], 256, 256, 16
    $region9: #{tpu_custom_call.1} parent=1 // pred_fallthru
      _
    // Predicated region
    $region10: #{tpu_custom_call.1} parent=1 // pred_check
      _
    $region11: #{tpu_custom_call.1} parent=1 // pred_check_branch
      %38 = sbr.rel (0) target = $region13
    $region12: #{tpu_custom_call.1} parent=1 // pred_region
      %40 = vsyncadd [#allocation6], 0
      %s42 = sshll.u32 %s2, 4
      %s43 = int_to_ptr.hbm [resolvable:$true] %s42
      %s44 = sshll.u32 [#allocation7], 4
      %s45 = int_to_ptr.vmem [resolvable:$true] %s44
      %47 = dma.hbm_to_vmem [thread:$0]  %s43, 32, %s45, [#allocation6]
    $region13: #{tpu_custom_call.1} parent=1 // pred_fallthru
      _
    // Predicated region
    $region14: #{tpu_custom_call.1} parent=1 // pred_check
      _
    $region15: #{tpu_custom_call.1} parent=1 // pred_check_branch
      %49 = sbr.rel (0) target = $region17
    $region16: #{tpu_custom_call.1} parent=1 // pred_region
      %51 = vsyncadd [#allocation9], 0
      %s52 = sshll.u32 %s3, 4
      %s53 = int_to_ptr.hbm [resolvable:$true] %s52
      %s54 = sshll.u32 [#allocation8], 4
      %s55 = int_to_ptr.vmem [resolvable:$true] %s54
      %60 = dma.hbm_to_vmem [thread:$0]  %s53, 8576, %s55, [#allocation9], 128, 128, 8
    $region17: #{tpu_custom_call.1} parent=1 // pred_fallthru
      _
    // Predicated region
    $region18: #{tpu_custom_call.1} parent=1 // pred_check
      _
    $region19: #{tpu_custom_call.1} parent=1 // pred_check_branch
      %62 = sbr.rel (0) target = $region21
    $region20: #{tpu_custom_call.1} parent=1 // pred_region
      %64 = dma.done [#allocation3], 128
    $region21: #{tpu_custom_call.1} parent=1 // pred_fallthru
      _
    // Predicated region
    $region22: #{tpu_custom_call.1} parent=1 // pred_check
      _
    $region23: #{tpu_custom_call.1} parent=1 // pred_check_branch
      %66 = sbr.rel (0) target = $region25
    $region24: #{tpu_custom_call.1} parent=1 // pred_region
      %68 = dma.done [#allocation6], 1024
    $region25: #{tpu_custom_call.1} parent=1 // pred_fallthru
      _
    // Predicated region
    $region26: #{tpu_custom_call.1} parent=1 // pred_check
      _
    $region27: #{tpu_custom_call.1} parent=1 // pred_check_branch
      %70 = sbr.rel (0) target = $region29
    $region28: #{tpu_custom_call.1} parent=1 // pred_region
      %72 = dma.done [#allocation6], 32
    $region29: #{tpu_custom_call.1} parent=1 // pred_fallthru
      _
    // Predicated region
    $region30: #{tpu_custom_call.1} parent=1 // pred_check
      _
    $region31: #{tpu_custom_call.1} parent=1 // pred_check_branch
      %74 = sbr.rel (0) target = $region33
    $region32: #{tpu_custom_call.1} parent=1 // pred_region
      %76 = dma.done [#allocation9], 8576
    $region33: #{tpu_custom_call.1} parent=1 // pred_fallthru
      _
    %v77 = vld [vmem:[#allocation2] sm:$0xff]
    %v78 = vld [vmem:[#allocation5] sm:$0xff]
    %v79 = vld [vmem:[#allocation5 + $0x8] sm:$0xff]
    %v80 = vld [vmem:[#allocation5 + $0x10] sm:$0xff]
    %v81 = vld [vmem:[#allocation5 + $0x18] sm:$0xff]
    %v82 = vld [vmem:[#allocation5 + $0x20] sm:$0xff]
    %v83 = vld [vmem:[#allocation5 + $0x28] sm:$0xff]
    %v84 = vld [vmem:[#allocation5 + $0x30] sm:$0xff]
    %v85 = vld [vmem:[#allocation5 + $0x38] sm:$0xff]
    %v86 = vld [vmem:[#allocation7] sm:$0x3]
    %v88 = vperm.slane %v86, 0
    %v89 = vperm.slane %v86, 1
    %vm92 = vcmask 261120
    %v94 = vsel %vm92, %v77, 0
    %96 = vmatpush.msra.mxu0 0.0
    %97 = vmatpush.msra.mxu0 0.0
    %98 = vmatpush.msra.mxu0 0.0
    %99 = vmatpush.msra.mxu0 0.0
    %100 = vmatpush.msra.mxu0 0.0
    %101 = vmatpush.msra.mxu0 0.0
    %102 = vmatpush.msra.mxu0 0.0
    %103 = vmatpush.msra.mxu0 0.0
    %104 = vmatpush.msra.mxu0 0.0
    %105 = vmatpush.msra.mxu0 0.0
    %106 = vmatpush.msra.mxu0 0.0
    %107 = vmatpush.msra.mxu0 0.0
    %108 = vmatpush.msra.mxu0 %v84
    %109 = vmatpush.msra.mxu0 %v82
    %110 = vmatpush.msra.mxu0 %v80
    %111 = vmatpush.msra.mxu0 %v78
    %112 = vmatmul.f32.gmra.mxu0 %v94
    %v113 = vpop.f32.mrf.mxu0
    %v114 = vadd.f32 %v88, %v113
    %115 = vdwg.mxu0
    %116 = vmatpush.msra.mxu0 0.0
    %117 = vmatpush.msra.mxu0 0.0
    %118 = vmatpush.msra.mxu0 0.0
    %119 = vmatpush.msra.mxu0 0.0
    %120 = vmatpush.msra.mxu0 0.0
    %121 = vmatpush.msra.mxu0 0.0
    %122 = vmatpush.msra.mxu0 0.0
    %123 = vmatpush.msra.mxu0 0.0
    %124 = vmatpush.msra.mxu0 0.0
    %125 = vmatpush.msra.mxu0 0.0
    %126 = vmatpush.msra.mxu0 0.0
    %127 = vmatpush.msra.mxu0 0.0
    %128 = vmatpush.msra.mxu0 %v85
    %129 = vmatpush.msra.mxu0 %v83
    %130 = vmatpush.msra.mxu0 %v81
    %131 = vmatpush.msra.mxu0 %v79
    %132 = vmatmul.f32.gmra.mxu0 %v94
    %v133 = vpop.f32.mrf.mxu0
    %v134 = vadd.f32 %v89, %v133
    %135 = vdwg.mxu0
    %v136 = vld [vmem:[#allocation8] sm:$0xff]
    %v137 = vld [vmem:[#allocation8 + $0x8] sm:$0xff]
    %v138 = vld [vmem:[#allocation8 + $0x10] sm:$0xff]
    %v139 = vld [vmem:[#allocation8 + $0x18] sm:$0xff]
    %v140 = vld [vmem:[#allocation8 + $0x20] sm:$0xff]
    %v141 = vld [vmem:[#allocation8 + $0x28] sm:$0xff]
    %v142 = vld [vmem:[#allocation8 + $0x30] sm:$0xff]
    %v143 = vld [vmem:[#allocation8 + $0x38] sm:$0xff]
    %v144 = vld [vmem:[#allocation8 + $0x40] sm:$0xff]
    %v145 = vld [vmem:[#allocation8 + $0x48] sm:$0xff]
    %v146 = vld [vmem:[#allocation8 + $0x50] sm:$0xff]
    %v147 = vld [vmem:[#allocation8 + $0x58] sm:$0xff]
    %v148 = vld [vmem:[#allocation8 + $0x60] sm:$0xff]
    %v149 = vld [vmem:[#allocation8 + $0x68] sm:$0xff]
    %v150 = vld [vmem:[#allocation8 + $0x70] sm:$0xff]
    %v151 = vld [vmem:[#allocation8 + $0x78] sm:$0xff]
    %v152 = vld [vmem:[#allocation8 + $0x80] sm:$0xff]
    %v153 = vld [vmem:[#allocation8 + $0x88] sm:$0xff]
    %v154 = vld [vmem:[#allocation8 + $0x90] sm:$0xff]
    %v155 = vld [vmem:[#allocation8 + $0x98] sm:$0xff]
    %v156 = vld [vmem:[#allocation8 + $0xa0] sm:$0xff]
    %v157 = vld [vmem:[#allocation8 + $0xa8] sm:$0xff]
    %v158 = vld [vmem:[#allocation8 + $0xb0] sm:$0xff]
    %v159 = vld [vmem:[#allocation8 + $0xb8] sm:$0xff]
    %v160 = vld [vmem:[#allocation8 + $0xc0] sm:$0xff]
    %v161 = vld [vmem:[#allocation8 + $0xc8] sm:$0xff]
    %v162 = vld [vmem:[#allocation8 + $0xd0] sm:$0xff]
    %v163 = vld [vmem:[#allocation8 + $0xd8] sm:$0xff]
    %v164 = vld [vmem:[#allocation8 + $0xe0] sm:$0xff]
    %v165 = vld [vmem:[#allocation8 + $0xe8] sm:$0xff]
    %v166 = vld [vmem:[#allocation8 + $0xf0] sm:$0xff]
    %v167 = vld [vmem:[#allocation8 + $0xf8] sm:$0xff]
    %v168 = vld [vmem:[#allocation8 + $0x100] sm:$0x1]
    %v169 = vperm.slane %v168, 0
    %170 = vmatpush.msra.mxu0 %v151
    %171 = vmatpush.msra.mxu0 %v150
    %172 = vmatpush.msra.mxu0 %v149
    %173 = vmatpush.msra.mxu0 %v148
    %174 = vmatpush.msra.mxu0 %v147
    %175 = vmatpush.msra.mxu0 %v146
    %176 = vmatpush.msra.mxu0 %v145
    %177 = vmatpush.msra.mxu0 %v144
    %178 = vmatpush.msra.mxu0 %v143
    %179 = vmatpush.msra.mxu0 %v142
    %180 = vmatpush.msra.mxu0 %v141
    %181 = vmatpush.msra.mxu0 %v140
    %182 = vmatpush.msra.mxu0 %v139
    %183 = vmatpush.msra.mxu0 %v138
    %184 = vmatpush.msra.mxu0 %v137
    %185 = vmatpush.msra.mxu0 %v136
    %186 = vmatmul.f32.gmra.mxu0 %v114
    %v187 = vpop.f32.mrf.mxu0
    %v188 = vadd.f32 %v169, %v187
    %189 = vdwg.mxu0
    %190 = vmatpush.msra.mxu0 %v167
    %191 = vmatpush.msra.mxu0 %v166
    %192 = vmatpush.msra.mxu0 %v165
    %193 = vmatpush.msra.mxu0 %v164
    %194 = vmatpush.msra.mxu0 %v163
    %195 = vmatpush.msra.mxu0 %v162
    %196 = vmatpush.msra.mxu0 %v161
    %197 = vmatpush.msra.mxu0 %v160
    %198 = vmatpush.msra.mxu0 %v159
    %199 = vmatpush.msra.mxu0 %v158
    %200 = vmatpush.msra.mxu0 %v157
    %201 = vmatpush.msra.mxu0 %v156
    %202 = vmatpush.msra.mxu0 %v155
    %203 = vmatpush.msra.mxu0 %v154
    %204 = vmatpush.msra.mxu0 %v153
    %205 = vmatpush.msra.mxu0 %v152
    %206 = vmatmul.f32.gmra.mxu0 %v134
    %v207 = vpop.f32.mrf.mxu0
    %v208 = vadd.f32 %v188, %v207
    %209 = vdwg.mxu0
    %v210 = vmax.f32 %v208, 0.0
    %v211 = vld [vmem:[#allocation8 + $0x108] sm:$0xff]
    %v212 = vld [vmem:[#allocation8 + $0x110] sm:$0xff]
    %v213 = vld [vmem:[#allocation8 + $0x118] sm:$0xff]
    %v214 = vld [vmem:[#allocation8 + $0x120] sm:$0xff]
    %v215 = vld [vmem:[#allocation8 + $0x128] sm:$0xff]
    %v216 = vld [vmem:[#allocation8 + $0x130] sm:$0xff]
    %v217 = vld [vmem:[#allocation8 + $0x138] sm:$0xff]
    %v218 = vld [vmem:[#allocation8 + $0x140] sm:$0xff]
    %v219 = vld [vmem:[#allocation8 + $0x148] sm:$0xff]
    %v220 = vld [vmem:[#allocation8 + $0x150] sm:$0xff]
    %v221 = vld [vmem:[#allocation8 + $0x158] sm:$0xff]
    %v222 = vld [vmem:[#allocation8 + $0x160] sm:$0xff]
    %v223 = vld [vmem:[#allocation8 + $0x168] sm:$0xff]
    %v224 = vld [vmem:[#allocation8 + $0x170] sm:$0xff]
    %v225 = vld [vmem:[#allocation8 + $0x178] sm:$0xff]
    %v226 = vld [vmem:[#allocation8 + $0x180] sm:$0xff]
    %v227 = vld [vmem:[#allocation8 + $0x188] sm:$0x1]
    %v228 = vperm.slane %v227, 0
    %229 = vmatpush.msra.mxu0 %v226
    %230 = vmatpush.msra.mxu0 %v225
    %231 = vmatpush.msra.mxu0 %v224
    %232 = vmatpush.msra.mxu0 %v223
    %233 = vmatpush.msra.mxu0 %v222
    %234 = vmatpush.msra.mxu0 %v221
    %235 = vmatpush.msra.mxu0 %v220
    %236 = vmatpush.msra.mxu0 %v219
    %237 = vmatpush.msra.mxu0 %v218
    %238 = vmatpush.msra.mxu0 %v217
    %239 = vmatpush.msra.mxu0 %v216
    %240 = vmatpush.msra.mxu0 %v215
    %241 = vmatpush.msra.mxu0 %v214
    %242 = vmatpush.msra.mxu0 %v213
    %243 = vmatpush.msra.mxu0 %v212
    %244 = vmatpush.msra.mxu0 %v211
    %245 = vmatmul.f32.gmra.mxu0 %v210
    %v246 = vpop.f32.mrf.mxu0
    %v247 = vadd.f32 %v228, %v246
    %248 = vdwg.mxu0
    %v249 = vmax.f32 %v247, 0.0
    %v250 = vld [vmem:[#allocation8 + $0x190] sm:$0xff]
    %v251 = vld [vmem:[#allocation8 + $0x198] sm:$0xff]
    %v252 = vld [vmem:[#allocation8 + $0x1a0] sm:$0xff]
    %v253 = vld [vmem:[#allocation8 + $0x1a8] sm:$0xff]
    %v254 = vld [vmem:[#allocation8 + $0x1b0] sm:$0xff]
    %v255 = vld [vmem:[#allocation8 + $0x1b8] sm:$0xff]
    %v256 = vld [vmem:[#allocation8 + $0x1c0] sm:$0xff]
    %v257 = vld [vmem:[#allocation8 + $0x1c8] sm:$0xff]
    %v258 = vld [vmem:[#allocation8 + $0x1d0] sm:$0xff]
    %v259 = vld [vmem:[#allocation8 + $0x1d8] sm:$0xff]
    %v260 = vld [vmem:[#allocation8 + $0x1e0] sm:$0xff]
    %v261 = vld [vmem:[#allocation8 + $0x1e8] sm:$0xff]
    %v262 = vld [vmem:[#allocation8 + $0x1f0] sm:$0xff]
    %v263 = vld [vmem:[#allocation8 + $0x1f8] sm:$0xff]
    %v264 = vld [vmem:[#allocation8 + $0x200] sm:$0xff]
    %v265 = vld [vmem:[#allocation8 + $0x208] sm:$0xff]
    %v266 = vld [vmem:[#allocation8 + $0x210] sm:$0x1]
    %v267 = vperm.slane %v266, 0
    %268 = vmatpush.msra.mxu0 %v265
    %269 = vmatpush.msra.mxu0 %v264
    %270 = vmatpush.msra.mxu0 %v263
    %271 = vmatpush.msra.mxu0 %v262
    %272 = vmatpush.msra.mxu0 %v261
    %273 = vmatpush.msra.mxu0 %v260
    %274 = vmatpush.msra.mxu0 %v259
    %275 = vmatpush.msra.mxu0 %v258
    %276 = vmatpush.msra.mxu0 %v257
    %277 = vmatpush.msra.mxu0 %v256
    %278 = vmatpush.msra.mxu0 %v255
    %279 = vmatpush.msra.mxu0 %v254
    %280 = vmatpush.msra.mxu0 %v253
    %281 = vmatpush.msra.mxu0 %v252
    %282 = vmatpush.msra.mxu0 %v251
    %283 = vmatpush.msra.mxu0 %v250
    %284 = vmatmul.f32.gmra.mxu0 %v249
    %v285 = vpop.f32.mrf.mxu0
    %v286 = vadd.f32 %v267, %v285
    %287 = vdwg.mxu0
    %288 = vst [vmem:[#allocation10] sm:$0xff] %v286
    // Predicated region
    $region34: #{tpu_custom_call.1} parent=1 // pred_check
      _
    $region35: #{tpu_custom_call.1} parent=1 // pred_check_branch
      %290 = sbr.rel (0) target = $region37
    $region36: #{tpu_custom_call.1} parent=1 // pred_region
      %292 = vsyncadd [#allocation4], 0
      %s294 = sshll.u32 [#allocation10], 4
      %s295 = int_to_ptr.vmem [resolvable:$true] %s294
      %s296 = sshll.u32 %s4, 4
      %s297 = int_to_ptr.hbm [resolvable:$true] %s296
      %299 = dma.vmem_to_hbm [thread:$0]  %s295, 128, %s297, [#allocation4]
    $region37: #{tpu_custom_call.1} parent=1 // pred_fallthru
      _
    // Predicated region
    $region38: #{tpu_custom_call.1} parent=1 // pred_check
      _
    $region39: #{tpu_custom_call.1} parent=1 // pred_check_branch
      %301 = sbr.rel (0) target = $region41
    $region40: #{tpu_custom_call.1} parent=1 // pred_region
      %303 = dma.done [#allocation4], 128
    $region41: #{tpu_custom_call.1} parent=1 // pred_fallthru
      _
    %304 = vsyncpa [#allocation3], 1
    %305 = vsyncpa [#allocation6], 1
    %306 = vsyncpa [#allocation9], 1
    %307 = vsyncpa [#allocation4], 1

</llo_original>
